<compile_context>
chip_gen: v7x
topology: tpu7x:2x2x1
jax: 0.10.0
libtpu: 0.0.40
codegen_flags: <defaults>
</compile_context>

<pallas_src>
import jax
import jax.numpy as jnp
from jax.experimental import pallas as pl
from jax.experimental.pallas import tpu as pltpu

_LANE = 128
_MAX_LANE_TILE = 2048          # >=512-wide tiles reach ~85% of HBM roofline
_VMEM_BUDGET_BYTES = 8 << 20   # conservative: fits default scoped VMEM on v5e/v6e/v7x


def _round_up(x: int, m: int) -> int:
    return ((x + m - 1) // m) * m


def get_positional_encoding(seq_len: int, d: int, n: int = 10000) -> jnp.ndarray:
    """Deterministic sin/cos positional encoding matching the PyTorch reference.

    Returns an array of shape (1, d, seq_len), float32. Odd `d` is handled the
    same way as the reference (last feature row stays zero).
    """
    half = d // 2
    k = jnp.arange(seq_len, dtype=jnp.float32)[:, None]       # (seq_len, 1)
    i = jnp.arange(half, dtype=jnp.float32)[None, :]          # (1, half)
    denominator = jnp.power(jnp.float32(n), 2.0 * i / d)      # (1, half)
    angles = k / denominator                                  # (seq_len, half)
    P = jnp.zeros((seq_len, d), dtype=jnp.float32)
    P = P.at[:, 0:2 * half:2].set(jnp.sin(angles))
    P = P.at[:, 1:2 * half:2].set(jnp.cos(angles))
    # transpose -> (d, seq_len), expand dims -> (1, d, seq_len)
    return jnp.transpose(P)[None, :, :].astype(jnp.float32)


def _pos_enc_kernel(x_ref, pe_ref, o_ref):
    # (Bt, Tn) + (1, Tn): the PE tile broadcasts over the batch rows of the tile.
    o_ref[...] = (x_ref[...] + pe_ref[...]).astype(o_ref.dtype)


@jax.jit
def positional_encoding_forward(x: jnp.ndarray, pe: jnp.ndarray) -> jnp.ndarray:
    """x: (B, C, L), pe: (1, C, L) -> x + pe, shape (B, C, L)."""
    B, C, L = x.shape
    assert pe.shape == (1, C, L), (pe.shape, (1, C, L))
    pe = pe.astype(x.dtype)
    itemsize = jnp.dtype(x.dtype).itemsize

    # ---- lane-dense flatten: (B, C, L) -> (B, N), pad N to a tile multiple ----
    N = C * L
    x2 = x.reshape(B, N)
    pe2 = pe.reshape(1, N)

    Tn = min(_round_up(N, _LANE), _MAX_LANE_TILE)   # lane tile, multiple of 128
    N_pad = _round_up(N, Tn)
    if N_pad != N:
        x2 = jnp.pad(x2, ((0, 0), (0, N_pad - N)))
        pe2 = jnp.pad(pe2, ((0, 0), (0, N_pad - N)))

    # Fold batch rows into each block up to the VMEM budget
    # (x + out, both double-buffered => ~4 tile copies per batch row).
    row_bytes = 4 * Tn * itemsize
    max_rows = max(1, _VMEM_BUDGET_BYTES // row_bytes)
    if B <= max_rows:
        Bt = B
    else:
        Bt = B  # fallback: keep the whole batch in one block (still correct)
        for cand in range(min(B, max_rows), 0, -1):
            # multiple-of-8 sublane blocks (or the full batch dim) keep tiling clean
            if B % cand == 0 and (cand % 8 == 0 or cand == B):
                Bt = cand
                break

    grid = (B // Bt, N_pad // Tn)

    cost = pl.CostEstimate(
        flops=B * N,
        transcendentals=0,
        bytes_accessed=(2 * B * N_pad + N_pad) * itemsize,
    )

    out2 = pl.pallas_call(
        _pos_enc_kernel,
        out_shape=jax.ShapeDtypeStruct((B, N_pad), x.dtype),
        grid_spec=pltpu.PrefetchScalarGridSpec(
            num_scalar_prefetch=0,
            grid=grid,
            in_specs=[
                # x: one (Bt, Tn) lane-dense tile per grid step.
                pl.BlockSpec((Bt, Tn), lambda i, j: (i, j)),
                # positional shift: same lane tile for every batch tile
                # (broadcast over batch inside the kernel, no replication in HBM).
                pl.BlockSpec((1, Tn), lambda i, j: (0, j)),
            ],
            out_specs=pl.BlockSpec((Bt, Tn), lambda i, j: (i, j)),
        ),
        compiler_params=pltpu.CompilerParams(
            dimension_semantics=("parallel", "parallel"),
        ),
        cost_estimate=cost,
    )(x2, pe2)

    if N_pad != N:
        out2 = out2[:, :N]
    return out2.reshape(B, C, L)


if __name__ == "__main__":
    # Small shapes consistent with the module: batch=2, input_features=8,
    # input_len=16 (C*L = 128, already lane-dense, single grid step).
    B, C, L = 2, 8, 16

    key = jax.random.PRNGKey(0)
    x = jax.random.normal(key, (B, C, L), dtype=jnp.float32)

    pe = get_positional_encoding(seq_len=L, d=C)  # (1, C, L)

    out = jax.block_until_ready(positional_encoding_forward(x, pe))

    # Sanity check against plain-JAX reference.
    ref = x + pe
    assert out.shape == (B, C, L)
    assert jnp.allclose(out, ref, atol=1e-6, rtol=1e-6)

    print("KERNEL_OK")
</pallas_src>

<mosaic_0001>
module attributes {stable_mosaic.version = 11 : i64} {
  func.func @_pos_enc_kernel(%arg0: i32, %arg1: i32, %arg2: memref<2x128xf32, #tpu.memory_space<vmem>>, %arg3: memref<1x128xf32, #tpu.memory_space<vmem>>, %arg4: memref<2x128xf32, #tpu.memory_space<vmem>>) attributes {dimension_semantics = [#tpu.dimension_semantics<parallel>, #tpu.dimension_semantics<parallel>], iteration_bounds = array<i64: 1, 1>, scalar_prefetch = 0 : i64, scratch_operands = 0 : i64, tpu.core_type = #tpu.core_type<tc>, window_params = [{transform_indices = @transform_0, window_bounds = array<i64: 2, 128>}, {transform_indices = @transform_1, window_bounds = array<i64: 1, 128>}, {transform_indices = @transform_2, window_bounds = array<i64: 2, 128>}]} {
    %c0 = arith.constant 0 : index
    %c0_0 = arith.constant 0 : index
    %0 = vector.load %arg2[%c0, %c0_0] : memref<2x128xf32, #tpu.memory_space<vmem>>, vector<2x128xf32>
    %c0_1 = arith.constant 0 : index
    %c0_2 = arith.constant 0 : index
    %1 = vector.load %arg3[%c0_1, %c0_2] : memref<1x128xf32, #tpu.memory_space<vmem>>, vector<1x128xf32>
    %2 = vector.broadcast %1 : vector<1x128xf32> to vector<2x128xf32>
    %3 = arith.addf %0, %2 : vector<2x128xf32>
    %c0_3 = arith.constant 0 : index
    %c0_4 = arith.constant 0 : index
    %4 = vector.load %arg4[%c0_3, %c0_4] : memref<2x128xf32, #tpu.memory_space<vmem>>, vector<2x128xf32>
    tpu.vector_store %arg4[%c0_3, %c0_4], %3 {strides = array<i32>} : memref<2x128xf32, #tpu.memory_space<vmem>>, vector<2x128xf32>,
    return
  }
  func.func @transform_0(%arg0: i32, %arg1: i32) -> (i32, i32) {
    %c0_i32 = arith.constant 0 : i32
    return %arg0, %arg1 : i32, i32
  }
  func.func @transform_1(%arg0: i32, %arg1: i32) -> (i32, i32) {
    %c0_i32 = arith.constant 0 : i32
    %c0_i32_0 = arith.constant 0 : i32
    return %c0_i32, %arg1 : i32, i32
  }
  func.func @transform_2(%arg0: i32, %arg1: i32) -> (i32, i32) {
    %c0_i32 = arith.constant 0 : i32
    return %arg0, %arg1 : i32, i32
  }
}

</mosaic_0001>

<llo_original>
// kernel: positional_encoding_forward.1
$region0: #{positional_encoding_forward.1}
  #allocation0 [shape = 'u32[]', space=smem, size = 0x4, offset = 0x4, fixed_abs, tag = 'smem constant byte address 0x4 - core index']
  #allocation1 [shape = 'u32[144,128]{1,0:T(1,128)}', space=vmem, size = 0x12000, scoped, tag = 'internal scratch']
  %s0 = inlined_call_operand.vmem [shape: f32[2,128], index: 0, kind: input, shape index: {}]
  %s1 = inlined_call_operand.vmem [shape: f32[1,128], index: 1, kind: input, shape index: {}]
  %s2 = inlined_call_operand.vmem [shape: f32[2,128], index: 2, kind: output, shape index: {}]
  %s3 = sld [smem:[#allocation0]]
  $region18: #{positional_encoding_forward.1} parent=0
    _
  %s5 = ssub.s32 1, %s3
  %s6 = scalar_select 0, %s5, %s3
  // Predicated region
  $region2: #{positional_encoding_forward.1} parent=0 // pred_check
    _
  $region3: #{positional_encoding_forward.1} parent=0 // pred_check_branch
    %8 = sbr.rel (0) target = $region5
  $region4: #{positional_encoding_forward.1} parent=0 // pred_region
    _
  $region5: #{positional_encoding_forward.1} parent=0 // pred_fallthru
    _
  // Predicated region
  $region6: #{positional_encoding_forward.1} parent=0 // pred_check
    _
  $region7: #{positional_encoding_forward.1} parent=0 // pred_check_branch
    %10 = sbr.rel (0) target = $region9
  $region8: #{positional_encoding_forward.1} parent=0 // pred_region
    _
  $region9: #{positional_encoding_forward.1} parent=0 // pred_fallthru
    _
  %v11 = vld [vmem:[%s0] sm:$0x3]
  %v12 = vld [vmem:[%s1] sm:$0x1]
  %v14 = vlaneseq
  %v15 = vshrl.u32 %v14, 7
  %v16 = vsub.s32 0, %v15
  %v17 = vrot.slane %v12, %v16
  %v19 = vadd.f32 %v11, %v17
  %20 = vst [vmem:[%s2] sm:$0x3] %v19
  // Predicated region
  $region10: #{positional_encoding_forward.1} parent=0 // pred_check
    _
  $region11: #{positional_encoding_forward.1} parent=0 // pred_check_branch
    %22 = sbr.rel (0) target = $region13
  $region12: #{positional_encoding_forward.1} parent=0 // pred_region
    _
  $region13: #{positional_encoding_forward.1} parent=0 // pred_fallthru
    _
  // Predicated region
  $region14: #{positional_encoding_forward.1} parent=0 // pred_check
    _
  $region15: #{positional_encoding_forward.1} parent=0 // pred_check_branch
    %24 = sbr.rel (0) target = $region17
  $region16: #{positional_encoding_forward.1} parent=0 // pred_region
    _
  $region17: #{positional_encoding_forward.1} parent=0 // pred_fallthru
    _

</llo_original>
